<compile_context>
chip_gen: v7x
topology: tpu7x:2x2x1
jax: 0.10.0
libtpu: 0.0.40
codegen_flags: <defaults>
</compile_context>

<pallas_src>
import functools

import jax
import jax.numpy as jnp
from jax.experimental import pallas as pl
from jax.experimental.pallas import tpu as pltpu

BN_EPS = 1e-5
LANE = 128


def _round_up(x, m):
    return ((x + m - 1) // m) * m


def _bn_relu(y, gamma, beta):
    """Fused BatchNorm1d(batch stats, biased var) + ReLU on an f32 (B,F) tile."""
    mean = jnp.mean(y, axis=0, keepdims=True)
    centered = y - mean
    var = jnp.mean(centered * centered, axis=0, keepdims=True)  # two-pass var
    scale = gamma * jax.lax.rsqrt(var + BN_EPS)
    return jnp.maximum(centered * scale + beta, 0.0)


def _skip_dense_kernel(x_ref, wh_ref, gh_ref, bh_ref, wl_ref, gl_ref, bl_ref,
                       o_ref, slab_ref, *, n_hidden, n_in_p, mm_dtype):
    """Fused SkipDenseConnection forward.

    Grid = (n_shards ["parallel"], tiles_per_shard ["arbitrary"]).

    x_ref:    (B, n_in_p)                 mm_dtype, resident (pre-padded/cast)
    wh_ref:   (n_hidden, n_in_p, n_in_p)  mm_dtype, resident (stacked, pre-T)
    gh_ref:   (n_hidden, 1, n_in_p)       f32
    bh_ref:   (n_hidden, 1, n_in_p)       f32
    wl_ref:   (K_cat, tile_n)             mm_dtype, streamed over the tile axis
    gl_ref:   (1, tile_n)                 f32
    bl_ref:   (1, tile_n)                 f32
    o_ref:    (B, tile_n)                 f32
    slab_ref: (B, K_cat) VMEM scratch     mm_dtype -- the "concat" buffer;
              rebuilt at the first inner step of each shard, reused after.
    """
    # Hidden layers are computed once per shard into the concat slab
    # (per-core private scratch; on 2-TC chips each core builds its own copy).
    @pl.when(pl.program_id(1) == 0)
    def _():
        h = x_ref[...]
        # TODO(synk): for n_hidden >> 4 switch this static unroll to
        # lax.fori_loop with pl.ds(pl.multiple_of(i*n_in_p, 128), n_in_p)
        # slab writes to bound vreg live ranges.
        for i in range(n_hidden):                        # static unroll
            w = wh_ref[i]                                # (n_in_p, n_in_p)
            y = jnp.dot(h, w, preferred_element_type=jnp.float32)
            h = _bn_relu(y, gh_ref[i], bh_ref[i]).astype(mm_dtype)
            # Write straight into this layer's concat column slice
            # (static, 128-aligned -> lane-dense store).
            slab_ref[:, i * n_in_p:(i + 1) * n_in_p] = h

    # Final layer on the current output-feature tile.
    y = jnp.dot(slab_ref[...], wl_ref[...], preferred_element_type=jnp.float32)
    o_ref[...] = _bn_relu(y, gl_ref[...], bl_ref[...]).astype(o_ref.dtype)


def _pack_params(params, mm_dtype):
    """Pad features to multiples of 128 and stack hidden layers.

    Zero padding preserves the math exactly: padded weight rows/cols are zero,
    padded BN columns normalize to zero and are sliced away after the kernel.
    """
    hidden = params["hidden"]
    n_hidden = len(hidden)
    n_in = hidden[0][0].shape[0]
    n_out = params["last"][0].shape[1]
    n_in_p = _round_up(n_in, LANE)
    n_out_p = _round_up(n_out, LANE)
    k_cat = n_hidden * n_in_p

    wh = jnp.zeros((n_hidden, n_in_p, n_in_p), jnp.float32)
    gh = jnp.zeros((n_hidden, 1, n_in_p), jnp.float32)
    bh = jnp.zeros((n_hidden, 1, n_in_p), jnp.float32)
    for i, (w_t, gamma, beta) in enumerate(hidden):
        wh = wh.at[i, :n_in, :n_in].set(w_t)
        gh = gh.at[i, 0, :n_in].set(gamma[0])
        bh = bh.at[i, 0, :n_in].set(beta[0])

    w_l, g_l, b_l = params["last"]
    wl = jnp.zeros((k_cat, n_out_p), jnp.float32)
    for i in range(n_hidden):
        wl = wl.at[i * n_in_p:i * n_in_p + n_in, :n_out].set(
            w_l[i * n_in:(i + 1) * n_in, :])
    gl = jnp.zeros((1, n_out_p), jnp.float32).at[0, :n_out].set(g_l[0])
    bl = jnp.zeros((1, n_out_p), jnp.float32).at[0, :n_out].set(b_l[0])

    meta = dict(n_in=n_in, n_out=n_out, n_in_p=n_in_p, n_out_p=n_out_p,
                n_hidden=n_hidden, k_cat=k_cat)
    return (wh.astype(mm_dtype), gh, bh, wl.astype(mm_dtype), gl, bl, meta)


def _vmem_capacity_bytes():
    """Per-TensorCore VMEM capacity; conservative 64 MiB (v7x) fallback."""
    try:
        cap = int(getattr(pltpu.get_tpu_info(), "vmem_capacity_bytes", 0))
        if cap > 0:
            return cap
    except Exception:  # query unavailable -> be conservative
        pass
    return 64 * 1024 * 1024


def _vmem_estimate(B, n_in_p, k_cat, n_hidden, tile_n, mm_bytes):
    """Footprint estimate; streamed/pipelined blocks counted double-buffered."""
    return (2 * B * n_in_p * mm_bytes                    # x (resident)
            + 2 * n_hidden * n_in_p * n_in_p * mm_bytes  # hidden weights
            + 2 * 2 * n_hidden * n_in_p * 4              # gh + bh
            + 2 * k_cat * tile_n * mm_bytes              # streamed W tile
            + 2 * 2 * tile_n * 4                         # gl + bl
            + 2 * B * tile_n * 4                         # output tile
            + B * k_cat * mm_bytes)                      # concat slab scratch


@functools.partial(jax.jit, static_argnames=("mm_dtype",))
def skip_dense_connection_forward(x, params, mm_dtype=jnp.bfloat16):
    """Full SkipDenseConnection forward as a single fused Pallas kernel.

    mm_dtype: dtype fed to the MXU (bf16 default for throughput; f32 available
    for bit-accurate checks). BN math is always f32 on the f32 accumulator.
    """
    wh, gh, bh, wl, gl, bl, meta = _pack_params(params, mm_dtype)
    B = x.shape[0]
    n_in_p = meta["n_in_p"]
    n_out_p = meta["n_out_p"]
    k_cat = meta["k_cat"]
    n_hidden = meta["n_hidden"]
    mm_bytes = jnp.dtype(mm_dtype).itemsize

    # Zero-pad + pre-cast the input features to the lane-dense MXU width/dtype.
    x_p = jnp.zeros((B, n_in_p), mm_dtype).at[:, :meta["n_in"]].set(
        x.astype(mm_dtype))

    # VMEM budget: chip capacity minus 1/8 headroom for compiler scratch.
    vmem_cap = _vmem_capacity_bytes()
    budget = (vmem_cap * 7) // 8
    margin = 2 * 1024 * 1024

    # Output-feature tile: largest lane-dense tile that fits the budget,
    # preferring 256-multiples (fills the 256-wide MXU N dim on v6e/v7x).
    candidates = [t for t in (1024, 768, 512, 256, 128)
                  if t <= n_out_p and n_out_p % t == 0]
    if n_out_p <= 1024 and n_out_p not in candidates:
        candidates.insert(0, n_out_p)
    tile_n = None
    for t in candidates:
        if _vmem_estimate(B, n_in_p, k_cat, n_hidden, t, mm_bytes) + margin <= budget:
            tile_n = t
            break
    if tile_n is None:
        # TODO(synk): batch-tiled two-pass-BN path for very large B would lift
        # this ceiling; for now fail loudly rather than under-provision VMEM.
        raise ValueError(
            "SkipDenseConnection kernel footprint exceeds VMEM budget "
            f"({budget} bytes); reduce batch size or feature widths.")
    est = _vmem_estimate(B, n_in_p, k_cat, n_hidden, tile_n, mm_bytes)
    vmem_limit = int(min(budget, max(2 * est, 32 * 1024 * 1024)))

    n_tiles = n_out_p // tile_n
    # Shard output tiles across TensorCores on 2-TC chips (v7x). On 1-TC chips
    # this only costs one redundant (cheap) hidden-stack recompute.
    n_shards = 2 if (n_tiles % 2 == 0 and n_tiles >= 2) else 1
    tiles_per_shard = n_tiles // n_shards

    kernel = functools.partial(_skip_dense_kernel, n_hidden=n_hidden,
                               n_in_p=n_in_p, mm_dtype=mm_dtype)

    # NOTE: x / wh / gh / bh have constant index maps and are fetched once;
    # the estimate above already charges them as double-buffered.
    out_p = pl.pallas_call(
        kernel,
        out_shape=jax.ShapeDtypeStruct((B, n_out_p), jnp.float32),
        grid_spec=pltpu.PrefetchScalarGridSpec(
            num_scalar_prefetch=0,
            grid=(n_shards, tiles_per_shard),
            in_specs=[
                pl.BlockSpec((B, n_in_p), lambda s, t: (0, 0)),
                pl.BlockSpec((n_hidden, n_in_p, n_in_p),
                             lambda s, t: (0, 0, 0)),
                pl.BlockSpec((n_hidden, 1, n_in_p), lambda s, t: (0, 0, 0)),
                pl.BlockSpec((n_hidden, 1, n_in_p), lambda s, t: (0, 0, 0)),
                pl.BlockSpec((k_cat, tile_n),
                             lambda s, t: (0, s * tiles_per_shard + t)),
                pl.BlockSpec((1, tile_n),
                             lambda s, t: (0, s * tiles_per_shard + t)),
                pl.BlockSpec((1, tile_n),
                             lambda s, t: (0, s * tiles_per_shard + t)),
            ],
            out_specs=pl.BlockSpec((B, tile_n),
                                   lambda s, t: (0, s * tiles_per_shard + t)),
            scratch_shapes=[pltpu.VMEM((B, k_cat), mm_dtype)],
        ),
        compiler_params=pltpu.CompilerParams(
            # Shard axis may split across TensorCores; the tile axis reuses the
            # slab built at its first step, so it must stay sequential.
            dimension_semantics=("parallel", "arbitrary"),
            vmem_limit_bytes=vmem_limit,
        ),
    )(x_p, wh, gh, bh, wl, gl, bl)

    return out_p[:, :meta["n_out"]]


def init_skip_dense_params(key, n_layers, n_in, n_out):
    """Deterministic parameter init matching the PyTorch module's shapes.

    Linear layers: PyTorch default U(-1/sqrt(fan_in), 1/sqrt(fan_in)), no bias
    (BatchNorm1d before activation -> bias=False). BN: gamma=1, beta=0.
    Weights stored pre-transposed as (fan_in, fan_out).
    """
    n_internal = n_layers - 1
    params = {"hidden": [], "last": None}
    keys = jax.random.split(key, n_layers)
    for i in range(n_internal):
        fan_in, fan_out = n_in, n_in
        bound = 1.0 / (fan_in ** 0.5)
        w_t = jax.random.uniform(keys[i], (fan_in, fan_out),
                                 minval=-bound, maxval=bound,
                                 dtype=jnp.float32)
        params["hidden"].append((w_t,
                                 jnp.ones((1, fan_out), jnp.float32),
                                 jnp.zeros((1, fan_out), jnp.float32)))
    fan_in, fan_out = n_in * n_internal, n_out
    bound = 1.0 / (fan_in ** 0.5)
    w_t = jax.random.uniform(keys[-1], (fan_in, fan_out),
                             minval=-bound, maxval=bound, dtype=jnp.float32)
    params["last"] = (w_t,
                      jnp.ones((1, fan_out), jnp.float32),
                      jnp.zeros((1, fan_out), jnp.float32))
    return params


def _reference_forward(x, params):
    """Pure-JAX f32 reference (module semantics, training-mode BN)."""
    def layer(h, w_t, gamma, beta):
        y = h @ w_t
        mean = jnp.mean(y, axis=0, keepdims=True)
        var = jnp.mean((y - mean) ** 2, axis=0, keepdims=True)
        return jnp.maximum((y - mean) / jnp.sqrt(var + BN_EPS) * gamma + beta,
                           0.0)

    outputs = []
    h = x
    for (w_t, gamma, beta) in params["hidden"]:
        h = layer(h, w_t, gamma, beta)
        outputs.append(h)
    cat = jnp.concatenate(outputs, axis=1)
    w_t, gamma, beta = params["last"]
    return layer(cat, w_t, gamma, beta)


def _run_case(batch, n_layers, n_in, n_out, f32_tol, bf16_tol):
    key = jax.random.PRNGKey(0)
    k_x, k_p = jax.random.split(key)
    x = jax.random.normal(k_x, (batch, n_in), dtype=jnp.float32)
    params = init_skip_dense_params(k_p, n_layers, n_in, n_out)

    ref = _reference_forward(x, params)

    # f32 MXU path: tight check against the pure-JAX reference.
    out_f32 = jax.block_until_ready(
        skip_dense_connection_forward(x, params, mm_dtype=jnp.float32))
    assert out_f32.shape == (batch, n_out), out_f32.shape
    assert jnp.allclose(out_f32, ref, atol=f32_tol, rtol=f32_tol), (
        float(jnp.max(jnp.abs(out_f32 - ref))))

    # bf16 MXU path (default, fast): looser tolerance vs. the f32 reference.
    out_bf16 = jax.block_until_ready(skip_dense_connection_forward(x, params))
    assert out_bf16.shape == (batch, n_out), out_bf16.shape
    assert bool(jnp.all(jnp.isfinite(out_bf16)))
    assert jnp.allclose(out_bf16, ref, atol=bf16_tol, rtol=bf16_tol), (
        float(jnp.max(jnp.abs(out_bf16 - ref))))


if __name__ == "__main__":
    # Small config: single output tile, single shard.
    _run_case(batch=8, n_layers=3, n_in=32, n_out=16,
              f32_tol=1e-4, bf16_tol=1e-1)
    # Wider config: exercises output-feature tiling (tile_n=1024, 4 tiles),
    # the 2-shard "parallel" outer axis and slab reuse across inner steps.
    _run_case(batch=16, n_layers=4, n_in=48, n_out=4096,
              f32_tol=1e-3, bf16_tol=1e-1)
    print("KERNEL_OK")
</pallas_src>

<mosaic_0001>
module attributes {stable_mosaic.version = 11 : i64} {
  func.func @_skip_dense_kernel(%arg0: i32, %arg1: i32, %arg2: memref<8x128xf32, #tpu.memory_space<vmem>>, %arg3: memref<2x128x128xf32, #tpu.memory_space<vmem>>, %arg4: memref<2x1x128xf32, #tpu.memory_space<vmem>>, %arg5: memref<2x1x128xf32, #tpu.memory_space<vmem>>, %arg6: memref<256x128xf32, #tpu.memory_space<vmem>>, %arg7: memref<1x128xf32, #tpu.memory_space<vmem>>, %arg8: memref<1x128xf32, #tpu.memory_space<vmem>>, %arg9: memref<8x128xf32, #tpu.memory_space<vmem>>, %arg10: memref<8x256xf32, #tpu.memory_space<vmem>>) attributes {dimension_semantics = [#tpu.dimension_semantics<parallel>, #tpu.dimension_semantics<arbitrary>], iteration_bounds = array<i64: 1, 1>, scalar_prefetch = 0 : i64, scratch_operands = 1 : i64, tpu.core_type = #tpu.core_type<tc>, window_params = [{pipeline_mode = #tpu.pipeline_mode<synchronous>, transform_indices = @transform_0, window_bounds = array<i64: 8, 128>}, {pipeline_mode = #tpu.pipeline_mode<synchronous>, transform_indices = @transform_1, window_bounds = array<i64: 2, 128, 128>}, {pipeline_mode = #tpu.pipeline_mode<synchronous>, transform_indices = @transform_2, window_bounds = array<i64: 2, 1, 128>}, {pipeline_mode = #tpu.pipeline_mode<synchronous>, transform_indices = @transform_3, window_bounds = array<i64: 2, 1, 128>}, {transform_indices = @transform_4, window_bounds = array<i64: 256, 128>}, {transform_indices = @transform_5, window_bounds = array<i64: 1, 128>}, {transform_indices = @transform_6, window_bounds = array<i64: 1, 128>}, {transform_indices = @transform_7, window_bounds = array<i64: 8, 128>}]} {
    %c0_i32 = arith.constant 0 : i32
    %0 = arith.cmpi eq, %arg1, %c0_i32 : i32
    %1 = arith.extui %0 : i1 to i32
    %c0_i32_0 = arith.constant 0 : i32
    %2 = arith.cmpi ne, %1, %c0_i32_0 : i32
    scf.if %2 {
      %c0_16 = arith.constant 0 : index
      %c0_17 = arith.constant 0 : index
      %30 = vector.load %arg2[%c0_16, %c0_17] : memref<8x128xf32, #tpu.memory_space<vmem>>, vector<8x128xf32>
      %c0_18 = arith.constant 0 : index
      %c0_19 = arith.constant 0 : index
      %c0_20 = arith.constant 0 : index
      %31 = vector.load %arg3[%c0_18, %c0_19, %c0_20] : memref<2x128x128xf32, #tpu.memory_space<vmem>>, vector<1x128x128xf32>
      %32 = vector.shape_cast %31 : vector<1x128x128xf32> to vector<128x128xf32>
      %cst_21 = arith.constant dense<0.000000e+00> : vector<8x128xf32>
      %33 = tpu.matmul %30, %32, %cst_21 {dimension_numbers = #tpu.dot_dimension_numbers<[1], [0], [0], [1], [0, 0, 1, 1], [], []>} : vector<8x128xf32>, vector<128x128xf32>, vector<8x128xf32> -> vector<8x128xf32>
      %c0_22 = arith.constant 0 : index
      %c0_23 = arith.constant 0 : index
      %c0_24 = arith.constant 0 : index
      %34 = vector.load %arg4[%c0_22, %c0_23, %c0_24] : memref<2x1x128xf32, #tpu.memory_space<vmem>>, vector<1x1x128xf32>
      %35 = vector.shape_cast %34 : vector<1x1x128xf32> to vector<1x128xf32>
      %c0_25 = arith.constant 0 : index
      %c0_26 = arith.constant 0 : index
      %c0_27 = arith.constant 0 : index
      %36 = vector.load %arg5[%c0_25, %c0_26, %c0_27] : memref<2x1x128xf32, #tpu.memory_space<vmem>>, vector<1x1x128xf32>
      %37 = vector.shape_cast %36 : vector<1x1x128xf32> to vector<1x128xf32>
      %cst_28 = arith.constant dense<0.000000e+00> : vector<128xf32>
      %38 = vector.multi_reduction <add>, %33, %cst_28 [0] : vector<8x128xf32> to vector<128xf32>
      %39 = vector.shape_cast %38 : vector<128xf32> to vector<1x128xf32>
      %cst_29 = arith.constant 8.000000e+00 : f32
      %40 = vector.broadcast %cst_29 : f32 to vector<1x128xf32>
      %41 = arith.divf %39, %40 : vector<1x128xf32>
      %42 = vector.broadcast %41 : vector<1x128xf32> to vector<8x128xf32>
      %43 = arith.subf %33, %42 : vector<8x128xf32>
      %44 = arith.mulf %43, %43 : vector<8x128xf32>
      %cst_30 = arith.constant dense<0.000000e+00> : vector<128xf32>
      %45 = vector.multi_reduction <add>, %44, %cst_30 [0] : vector<8x128xf32> to vector<128xf32>
      %46 = vector.shape_cast %45 : vector<128xf32> to vector<1x128xf32>
      %cst_31 = arith.constant 8.000000e+00 : f32
      %47 = vector.broadcast %cst_31 : f32 to vector<1x128xf32>
      %48 = arith.divf %46, %47 : vector<1x128xf32>
      %cst_32 = arith.constant 9.99999974E-6 : f32
      %49 = vector.broadcast %cst_32 : f32 to vector<1x128xf32>
      %50 = arith.addf %48, %49 : vector<1x128xf32>
      %51 = math.rsqrt %50 : vector<1x128xf32>
      %52 = arith.mulf %35, %51 : vector<1x128xf32>
      %53 = vector.broadcast %52 : vector<1x128xf32> to vector<8x128xf32>
      %54 = arith.mulf %43, %53 : vector<8x128xf32>
      %55 = vector.broadcast %37 : vector<1x128xf32> to vector<8x128xf32>
      %56 = arith.addf %54, %55 : vector<8x128xf32>
      %cst_33 = arith.constant 0.000000e+00 : f32
      %57 = vector.broadcast %cst_33 : f32 to vector<8x128xf32>
      %58 = arith.maximumf %56, %57 : vector<8x128xf32>
      %c0_34 = arith.constant 0 : index
      %c0_35 = arith.constant 0 : index
      %59 = vector.load %arg10[%c0_34, %c0_35] : memref<8x256xf32, #tpu.memory_space<vmem>>, vector<8x128xf32>
      tpu.vector_store %arg10[%c0_34, %c0_35], %58 {strides = array<i32>} : memref<8x256xf32, #tpu.memory_space<vmem>>, vector<8x128xf32>,
      %c1 = arith.constant 1 : index
      %c0_36 = arith.constant 0 : index
      %c0_37 = arith.constant 0 : index
      %60 = vector.load %arg3[%c1, %c0_36, %c0_37] : memref<2x128x128xf32, #tpu.memory_space<vmem>>, vector<1x128x128xf32>
      %61 = vector.shape_cast %60 : vector<1x128x128xf32> to vector<128x128xf32>
      %cst_38 = arith.constant dense<0.000000e+00> : vector<8x128xf32>
      %62 = tpu.matmul %58, %61, %cst_38 {dimension_numbers = #tpu.dot_dimension_numbers<[1], [0], [0], [1], [0, 0, 1, 1], [], []>} : vector<8x128xf32>, vector<128x128xf32>, vector<8x128xf32> -> vector<8x128xf32>
      %c1_39 = arith.constant 1 : index
      %c0_40 = arith.constant 0 : index
      %c0_41 = arith.constant 0 : index
      %63 = vector.load %arg4[%c1_39, %c0_40, %c0_41] : memref<2x1x128xf32, #tpu.memory_space<vmem>>, vector<1x1x128xf32>
      %64 = vector.shape_cast %63 : vector<1x1x128xf32> to vector<1x128xf32>
      %c1_42 = arith.constant 1 : index
      %c0_43 = arith.constant 0 : index
      %c0_44 = arith.constant 0 : index
      %65 = vector.load %arg5[%c1_42, %c0_43, %c0_44] : memref<2x1x128xf32, #tpu.memory_space<vmem>>, vector<1x1x128xf32>
      %66 = vector.shape_cast %65 : vector<1x1x128xf32> to vector<1x128xf32>
      %cst_45 = arith.constant dense<0.000000e+00> : vector<128xf32>
      %67 = vector.multi_reduction <add>, %62, %cst_45 [0] : vector<8x128xf32> to vector<128xf32>
      %68 = vector.shape_cast %67 : vector<128xf32> to vector<1x128xf32>
      %cst_46 = arith.constant 8.000000e+00 : f32
      %69 = vector.broadcast %cst_46 : f32 to vector<1x128xf32>
      %70 = arith.divf %68, %69 : vector<1x128xf32>
      %71 = vector.broadcast %70 : vector<1x128xf32> to vector<8x128xf32>
      %72 = arith.subf %62, %71 : vector<8x128xf32>
      %73 = arith.mulf %72, %72 : vector<8x128xf32>
      %cst_47 = arith.constant dense<0.000000e+00> : vector<128xf32>
      %74 = vector.multi_reduction <add>, %73, %cst_47 [0] : vector<8x128xf32> to vector<128xf32>
      %75 = vector.shape_cast %74 : vector<128xf32> to vector<1x128xf32>
      %cst_48 = arith.constant 8.000000e+00 : f32
      %76 = vector.broadcast %cst_48 : f32 to vector<1x128xf32>
      %77 = arith.divf %75, %76 : vector<1x128xf32>
      %cst_49 = arith.constant 9.99999974E-6 : f32
      %78 = vector.broadcast %cst_49 : f32 to vector<1x128xf32>
      %79 = arith.addf %77, %78 : vector<1x128xf32>
      %80 = math.rsqrt %79 : vector<1x128xf32>
      %81 = arith.mulf %64, %80 : vector<1x128xf32>
      %82 = vector.broadcast %81 : vector<1x128xf32> to vector<8x128xf32>
      %83 = arith.mulf %72, %82 : vector<8x128xf32>
      %84 = vector.broadcast %66 : vector<1x128xf32> to vector<8x128xf32>
      %85 = arith.addf %83, %84 : vector<8x128xf32>
      %cst_50 = arith.constant 0.000000e+00 : f32
      %86 = vector.broadcast %cst_50 : f32 to vector<8x128xf32>
      %87 = arith.maximumf %85, %86 : vector<8x128xf32>
      %c0_51 = arith.constant 0 : index
      %c128 = arith.constant 128 : index
      %88 = vector.load %arg10[%c0_51, %c128] : memref<8x256xf32, #tpu.memory_space<vmem>>, vector<8x128xf32>
      tpu.vector_store %arg10[%c0_51, %c128], %87 {strides = array<i32>} : memref<8x256xf32, #tpu.memory_space<vmem>>, vector<8x128xf32>,
    } else {
    }
    %c0 = arith.constant 0 : index
    %c0_1 = arith.constant 0 : index
    %3 = vector.load %arg10[%c0, %c0_1] : memref<8x256xf32, #tpu.memory_space<vmem>>, vector<8x256xf32>
    %c0_2 = arith.constant 0 : index
    %c0_3 = arith.constant 0 : index
    %4 = vector.load %arg6[%c0_2, %c0_3] : memref<256x128xf32, #tpu.memory_space<vmem>>, vector<256x128xf32>
    %cst = arith.constant dense<0.000000e+00> : vector<8x128xf32>
    %5 = tpu.matmul %3, %4, %cst {dimension_numbers = #tpu.dot_dimension_numbers<[1], [0], [0], [1], [0, 0, 1, 1], [], []>} : vector<8x256xf32>, vector<256x128xf32>, vector<8x128xf32> -> vector<8x128xf32>
    %c0_4 = arith.constant 0 : index
    %c0_5 = arith.constant 0 : index
    %6 = vector.load %arg7[%c0_4, %c0_5] : memref<1x128xf32, #tpu.memory_space<vmem>>, vector<1x128xf32>
    %c0_6 = arith.constant 0 : index
    %c0_7 = arith.constant 0 : index
    %7 = vector.load %arg8[%c0_6, %c0_7] : memref<1x128xf32, #tpu.memory_space<vmem>>, vector<1x128xf32>
    %cst_8 = arith.constant dense<0.000000e+00> : vector<128xf32>
    %8 = vector.multi_reduction <add>, %5, %cst_8 [0] : vector<8x128xf32> to vector<128xf32>
    %9 = vector.shape_cast %8 : vector<128xf32> to vector<1x128xf32>
    %cst_9 = arith.constant 8.000000e+00 : f32
    %10 = vector.broadcast %cst_9 : f32 to vector<1x128xf32>
    %11 = arith.divf %9, %10 : vector<1x128xf32>
    %12 = vector.broadcast %11 : vector<1x128xf32> to vector<8x128xf32>
    %13 = arith.subf %5, %12 : vector<8x128xf32>
    %14 = arith.mulf %13, %13 : vector<8x128xf32>
    %cst_10 = arith.constant dense<0.000000e+00> : vector<128xf32>
    %15 = vector.multi_reduction <add>, %14, %cst_10 [0] : vector<8x128xf32> to vector<128xf32>
    %16 = vector.shape_cast %15 : vector<128xf32> to vector<1x128xf32>
    %cst_11 = arith.constant 8.000000e+00 : f32
    %17 = vector.broadcast %cst_11 : f32 to vector<1x128xf32>
    %18 = arith.divf %16, %17 : vector<1x128xf32>
    %cst_12 = arith.constant 9.99999974E-6 : f32
    %19 = vector.broadcast %cst_12 : f32 to vector<1x128xf32>
    %20 = arith.addf %18, %19 : vector<1x128xf32>
    %21 = math.rsqrt %20 : vector<1x128xf32>
    %22 = arith.mulf %6, %21 : vector<1x128xf32>
    %23 = vector.broadcast %22 : vector<1x128xf32> to vector<8x128xf32>
    %24 = arith.mulf %13, %23 : vector<8x128xf32>
    %25 = vector.broadcast %7 : vector<1x128xf32> to vector<8x128xf32>
    %26 = arith.addf %24, %25 : vector<8x128xf32>
    %cst_13 = arith.constant 0.000000e+00 : f32
    %27 = vector.broadcast %cst_13 : f32 to vector<8x128xf32>
    %28 = arith.maximumf %26, %27 : vector<8x128xf32>
    %c0_14 = arith.constant 0 : index
    %c0_15 = arith.constant 0 : index
    %29 = vector.load %arg9[%c0_14, %c0_15] : memref<8x128xf32, #tpu.memory_space<vmem>>, vector<8x128xf32>
    tpu.vector_store %arg9[%c0_14, %c0_15], %28 {strides = array<i32>} : memref<8x128xf32, #tpu.memory_space<vmem>>, vector<8x128xf32>,
    return
  }
  func.func @transform_0(%arg0: i32, %arg1: i32) -> (i32, i32) {
    %c0_i32 = arith.constant 0 : i32
    %c0_i32_0 = arith.constant 0 : i32
    %c0_i32_1 = arith.constant 0 : i32
    return %c0_i32, %c0_i32_0 : i32, i32
  }
  func.func @transform_1(%arg0: i32, %arg1: i32) -> (i32, i32, i32) {
    %c0_i32 = arith.constant 0 : i32
    %c0_i32_0 = arith.constant 0 : i32
    %c0_i32_1 = arith.constant 0 : i32
    %c0_i32_2 = arith.constant 0 : i32
    return %c0_i32, %c0_i32_0, %c0_i32_1 : i32, i32, i32
  }
  func.func @transform_2(%arg0: i32, %arg1: i32) -> (i32, i32, i32) {
    %c0_i32 = arith.constant 0 : i32
    %c0_i32_0 = arith.constant 0 : i32
    %c0_i32_1 = arith.constant 0 : i32
    %c0_i32_2 = arith.constant 0 : i32
    return %c0_i32, %c0_i32_0, %c0_i32_1 : i32, i32, i32
  }
  func.func @transform_3(%arg0: i32, %arg1: i32) -> (i32, i32, i32) {
    %c0_i32 = arith.constant 0 : i32
    %c0_i32_0 = arith.constant 0 : i32
    %c0_i32_1 = arith.constant 0 : i32
    %c0_i32_2 = arith.constant 0 : i32
    return %c0_i32, %c0_i32_0, %c0_i32_1 : i32, i32, i32
  }
  func.func @transform_4(%arg0: i32, %arg1: i32) -> (i32, i32) {
    %c1_i32 = arith.constant 1 : i32
    %0 = arith.muli %arg0, %c1_i32 : i32
    %1 = arith.addi %0, %arg1 : i32
    %c0_i32 = arith.constant 0 : i32
    %c0_i32_0 = arith.constant 0 : i32
    return %c0_i32, %1 : i32, i32
  }
  func.func @transform_5(%arg0: i32, %arg1: i32) -> (i32, i32) {
    %c1_i32 = arith.constant 1 : i32
    %0 = arith.muli %arg0, %c1_i32 : i32
    %1 = arith.addi %0, %arg1 : i32
    %c0_i32 = arith.constant 0 : i32
    %c0_i32_0 = arith.constant 0 : i32
    return %c0_i32, %1 : i32, i32
  }
  func.func @transform_6(%arg0: i32, %arg1: i32) -> (i32, i32) {
    %c1_i32 = arith.constant 1 : i32
    %0 = arith.muli %arg0, %c1_i32 : i32
    %1 = arith.addi %0, %arg1 : i32
    %c0_i32 = arith.constant 0 : i32
    %c0_i32_0 = arith.constant 0 : i32
    return %c0_i32, %1 : i32, i32
  }
  func.func @transform_7(%arg0: i32, %arg1: i32) -> (i32, i32) {
    %c1_i32 = arith.constant 1 : i32
    %0 = arith.muli %arg0, %c1_i32 : i32
    %1 = arith.addi %0, %arg1 : i32
    %c0_i32 = arith.constant 0 : i32
    %c0_i32_0 = arith.constant 0 : i32
    return %c0_i32, %1 : i32, i32
  }
}

</mosaic_0001>

<llo_original>
// kernel: skip_dense_connection_forward.1
$region0: #{skip_dense_connection_forward.1}
  #allocation0 [shape = 'u32[]', space=smem, size = 0x4, offset = 0x4, fixed_abs, tag = 'smem constant byte address 0x4 - core index']
  #allocation1 [shape = 'u32[144,128]{1,0:T(1,128)}', space=vmem, size = 0x12000, scoped, tag = 'internal scratch']
  #allocation2 [shape = 'f32[8,256]{1,0:T(8,128)}', space=vmem, size = 0x2000, scoped, tag = 'scratch operand']
  %s0 = inlined_call_operand.vmem [shape: f32[8,128], index: 0, kind: input, shape index: {}]
  %s1 = inlined_call_operand.vmem [shape: f32[2,128,128], index: 1, kind: input, shape index: {}]
  %s2 = inlined_call_operand.vmem [shape: f32[2,1,128], index: 2, kind: input, shape index: {}]
  %s3 = inlined_call_operand.vmem [shape: f32[2,1,128], index: 3, kind: input, shape index: {}]
  %s4 = inlined_call_operand.vmem [shape: f32[256,128], index: 4, kind: input, shape index: {}]
  %s5 = inlined_call_operand.vmem [shape: f32[1,128], index: 5, kind: input, shape index: {}]
  %s6 = inlined_call_operand.vmem [shape: f32[1,128], index: 6, kind: input, shape index: {}]
  %s7 = inlined_call_operand.hbm [shape: f32[8,128], index: 7, kind: output, shape index: {}]
  %s8 = sld [smem:[#allocation0]]
  $region42: #{skip_dense_connection_forward.1} parent=0
    _
  %s10 = ssub.s32 1, %s8
  %s11 = scalar_select 0, %s10, %s8
  $region1: #{skip_dense_connection_forward.1} parent=0
    #allocation3 [shape = 'u8[4096]{0}', space=vmem, size = 0x1000, scoped, tag = 'output window, operand 0, single buffered']
    #allocation4 [shape = 's32[1]{0}', space=sflag, size = 0x4, scoped, tag = 'scoped memory for skip_dense_connection_forward.1']
    %12 = vsyncpa [#allocation4], 0
    // Predicated region
    $region2: #{skip_dense_connection_forward.1} parent=1 // pred_check
      _
    $region3: #{skip_dense_connection_forward.1} parent=1 // pred_check_branch
      %14 = sbr.rel (0) target = $region5
    $region4: #{skip_dense_connection_forward.1} parent=1 // pred_region
      _
    $region5: #{skip_dense_connection_forward.1} parent=1 // pred_fallthru
      _
    // Predicated region
    $region6: #{skip_dense_connection_forward.1} parent=1 // pred_check
      _
    $region7: #{skip_dense_connection_forward.1} parent=1 // pred_check_branch
      %16 = sbr.rel (0) target = $region9
    $region8: #{skip_dense_connection_forward.1} parent=1 // pred_region
      _
    $region9: #{skip_dense_connection_forward.1} parent=1 // pred_fallthru
      _
    // Predicated region
    $region10: #{skip_dense_connection_forward.1} parent=1 // pred_check
      _
    $region11: #{skip_dense_connection_forward.1} parent=1 // pred_check_branch
      %18 = sbr.rel (0) target = $region13
    $region12: #{skip_dense_connection_forward.1} parent=1 // pred_region
      _
    $region13: #{skip_dense_connection_forward.1} parent=1 // pred_fallthru
      _
    // Predicated region
    $region14: #{skip_dense_connection_forward.1} parent=1 // pred_check
      _
    $region15: #{skip_dense_connection_forward.1} parent=1 // pred_check_branch
      %20 = sbr.rel (0) target = $region17
    $region16: #{skip_dense_connection_forward.1} parent=1 // pred_region
      _
    $region17: #{skip_dense_connection_forward.1} parent=1 // pred_fallthru
      _
    // Predicated region
    $region18: #{skip_dense_connection_forward.1} parent=1 // pred_check
      _
    $region19: #{skip_dense_connection_forward.1} parent=1 // pred_check_branch
      %22 = sbr.rel (0) target = $region21
    $region20: #{skip_dense_connection_forward.1} parent=1 // pred_region
      %s23 = sadd.s32 0, 0
      %p24 = scmp.lt.s32.totalorder %s23, 0
      %s25 = scalar_select %p24, %s23, 0
      %s26 = smul.addr %s25, 8
      %s27 = scalar_lea.vmem %s4, %s26
      %s28 = sadd.s32 0, 0
    $region21: #{skip_dense_connection_forward.1} parent=1 // pred_fallthru
      _
    // Predicated region
    $region22: #{skip_dense_connection_forward.1} parent=1 // pred_check
      _
    $region23: #{skip_dense_connection_forward.1} parent=1 // pred_check_branch
      %30 = sbr.rel (0) target = $region25
    $region24: #{skip_dense_connection_forward.1} parent=1 // pred_region
      %s31 = sadd.s32 0, 0
      %p32 = scmp.lt.s32.totalorder %s31, 0
      %s33 = scalar_select %p32, %s31, 0
      %s34 = scalar_lea.vmem %s5, %s33
      %s35 = sadd.s32 0, 0
    $region25: #{skip_dense_connection_forward.1} parent=1 // pred_fallthru
      _
    // Predicated region
    $region26: #{skip_dense_connection_forward.1} parent=1 // pred_check
      _
    $region27: #{skip_dense_connection_forward.1} parent=1 // pred_check_branch
      %37 = sbr.rel (0) target = $region29
    $region28: #{skip_dense_connection_forward.1} parent=1 // pred_region
      %s38 = sadd.s32 0, 0
      %p39 = scmp.lt.s32.totalorder %s38, 0
      %s40 = scalar_select %p39, %s38, 0
      %s41 = scalar_lea.vmem %s6, %s40
      %s42 = sadd.s32 0, 0
    $region29: #{skip_dense_connection_forward.1} parent=1 // pred_fallthru
      _
    %s43 = sadd.s32 0, 0
    %p44 = scmp.lt.s32.totalorder %s43, 0
    %s45 = scalar_select %p44, %s43, 0
    %s46 = smul.addr %s45, 8
    %s47 = scalar_lea.vmem %s4, %s46
    %s48 = sadd.s32 0, 0
    %p49 = scmp.lt.s32.totalorder %s48, 0
    %s50 = scalar_select %p49, %s48, 0
    %s51 = scalar_lea.vmem %s5, %s50
    %s52 = sadd.s32 0, 0
    %p53 = scmp.lt.s32.totalorder %s52, 0
    %s54 = scalar_select %p53, %s52, 0
    %s55 = scalar_lea.vmem %s6, %s54
    %s56 = sadd.s32 0, 0
    %p57 = scmp.lt.s32.totalorder %s56, 0
    %s58 = scalar_select %p57, %s56, 0
    %s59 = smul.addr %s58, 8
    %s60 = scalar_lea.vmem %s4, %s59
    %s61 = sadd.s32 0, 0
    %s62 = sadd.s32 0, 0
    %p63 = scmp.lt.s32.totalorder %s62, 0
    %s64 = scalar_select %p63, %s62, 0
    %s65 = scalar_lea.vmem %s5, %s64
    %s66 = sadd.s32 0, 0
    %s67 = sadd.s32 0, 0
    %p68 = scmp.lt.s32.totalorder %s67, 0
    %s69 = scalar_select %p68, %s67, 0
    %s70 = scalar_lea.vmem %s6, %s69
    %s71 = sadd.s32 0, 0
    %s72 = sadd.s32 0, 0
    %p73 = scmp.eq.s32.totalorder 0, 0
    // Predicated region
    $region30: #{skip_dense_connection_forward.1} parent=1 // pred_check
      %p74 = pneg %p73
    $region31: #{skip_dense_connection_forward.1} parent=1 // pred_check_branch
      %76 = sbr.rel (%p74) target = $region33
    $region32: #{skip_dense_connection_forward.1} parent=1 // pred_region
      %v77 = vld [vmem:[%s0] sm:$0xff]
      %v78 = vld [vmem:[%s1] sm:$0xff]
      %v79 = vld [vmem:[%s1 + $0x8] sm:$0xff]
      %v80 = vld [vmem:[%s1 + $0x10] sm:$0xff]
      %v81 = vld [vmem:[%s1 + $0x18] sm:$0xff]
      %v82 = vld [vmem:[%s1 + $0x20] sm:$0xff]
      %v83 = vld [vmem:[%s1 + $0x28] sm:$0xff]
      %v84 = vld [vmem:[%s1 + $0x30] sm:$0xff]
      %v85 = vld [vmem:[%s1 + $0x38] sm:$0xff]
      %v86 = vld [vmem:[%s1 + $0x40] sm:$0xff]
      %v87 = vld [vmem:[%s1 + $0x48] sm:$0xff]
      %v88 = vld [vmem:[%s1 + $0x50] sm:$0xff]
      %v89 = vld [vmem:[%s1 + $0x58] sm:$0xff]
      %v90 = vld [vmem:[%s1 + $0x60] sm:$0xff]
      %v91 = vld [vmem:[%s1 + $0x68] sm:$0xff]
      %v92 = vld [vmem:[%s1 + $0x70] sm:$0xff]
      %v93 = vld [vmem:[%s1 + $0x78] sm:$0xff]
      %94 = vmatprep.subr.mxu0 0.0
      %95 = vmatpush1.msra.mxu0 %v78
      %96 = vmatprep.subr.mxu0 0.0
      %97 = vmatpush1.msra.mxu0 %v79
      %98 = vmatprep.subr.mxu0 0.0
      %99 = vmatpush1.msra.mxu0 %v80
      %100 = vmatprep.subr.mxu0 0.0
      %101 = vmatpush1.msra.mxu0 %v81
      %102 = vmatprep.subr.mxu0 0.0
      %103 = vmatpush1.msra.mxu0 %v82
      %104 = vmatprep.subr.mxu0 0.0
      %105 = vmatpush1.msra.mxu0 %v83
      %106 = vmatprep.subr.mxu0 0.0
      %107 = vmatpush1.msra.mxu0 %v84
      %108 = vmatprep.subr.mxu0 0.0
      %109 = vmatpush1.msra.mxu0 %v85
      %110 = vmatprep.subr.mxu0 0.0
      %111 = vmatpush1.msra.mxu0 %v86
      %112 = vmatprep.subr.mxu0 0.0
      %113 = vmatpush1.msra.mxu0 %v87
      %114 = vmatprep.subr.mxu0 0.0
      %115 = vmatpush1.msra.mxu0 %v88
      %116 = vmatprep.subr.mxu0 0.0
      %117 = vmatpush1.msra.mxu0 %v89
      %118 = vmatprep.subr.mxu0 0.0
      %119 = vmatpush1.msra.mxu0 %v90
      %120 = vmatprep.subr.mxu0 0.0
      %121 = vmatpush1.msra.mxu0 %v91
      %122 = vmatprep.subr.mxu0 0.0
      %123 = vmatpush1.msra.mxu0 %v92
      %124 = vmatprep.subr.mxu0 0.0
      %125 = vmatpush1.msra.mxu0 %v93
      %126 = vmatprep.subr.mxu0 0.0
      %127 = vmatpush1.msra.mxu0 0.0
      %128 = vmatprep.subr.mxu0 0.0
      %129 = vmatpush1.msra.mxu0 0.0
      %130 = vmatprep.subr.mxu0 0.0
      %131 = vmatpush1.msra.mxu0 0.0
      %132 = vmatprep.subr.mxu0 0.0
      %133 = vmatpush1.msra.mxu0 0.0
      %134 = vmatprep.subr.mxu0 0.0
      %135 = vmatpush1.msra.mxu0 0.0
      %136 = vmatprep.subr.mxu0 0.0
      %137 = vmatpush1.msra.mxu0 0.0
      %138 = vmatprep.subr.mxu0 0.0
      %139 = vmatpush1.msra.mxu0 0.0
      %140 = vmatprep.subr.mxu0 0.0
      %141 = vmatpush1.msra.mxu0 0.0
      %142 = vmatprep.subr.mxu0 0.0
      %143 = vmatpush1.msra.mxu0 0.0
      %144 = vmatprep.subr.mxu0 0.0
      %145 = vmatpush1.msra.mxu0 0.0
      %146 = vmatprep.subr.mxu0 0.0
      %147 = vmatpush1.msra.mxu0 0.0
      %148 = vmatprep.subr.mxu0 0.0
      %149 = vmatpush1.msra.mxu0 0.0
      %150 = vmatprep.subr.mxu0 0.0
      %151 = vmatpush1.msra.mxu0 0.0
      %152 = vmatprep.subr.mxu0 0.0
      %153 = vmatpush1.msra.mxu0 0.0
      %154 = vmatprep.subr.mxu0 0.0
      %155 = vmatpush1.msra.mxu0 0.0
      %156 = vmatprep.subr.mxu0 0.0
      %157 = vmatpush1.msra.mxu0 0.0
      %158 = vmatprep.mubr.f32.mxu0 0.0
      %159 = vmatmul.mubr.f32.gmra.mrb[0].mxu0 %v77
      %v160 = vpop.f32.mrb[0].mxu0
      %v161 = vadd.f32 0.0, %v160
      %v162 = vpop.f32.mrb[0].mxu0
      %163 = vdwg.mxu0
      %v164 = vld [vmem:[%s2] sm:$0x1]
      %v165 = vld [vmem:[%s3] sm:$0x1]
      %v166 = vrot.slane %v161, 4
      %v167 = vadd.f32 %v161, %v166
      %v168 = vrot.slane %v167, 2
      %v169 = vadd.f32 %v167, %v168
      %v170 = vrot.slane %v169, 1
      %v171 = vadd.f32 %v169, %v170
      %v172 = vrcp.pop 8.0
      %v173 = vmul.f32 %v171, %v172
      %v174 = vsub.f32 %v161, %v173
      %v175 = vmul.f32 %v174, %v174
      %v176 = vrot.slane %v175, 4
      %v177 = vadd.f32 %v175, %v176
      %v178 = vrot.slane %v177, 2
      %v179 = vadd.f32 %v177, %v178
      %v180 = vrot.slane %v179, 1
      %v181 = vadd.f32 %v179, %v180
      %v182 = vmul.f32 %v181, %v172
      %v183 = vadd.f32 %v182, 1e-05
      %v184 = vrsqrt.pop %v183
      %v185 = vmul.f32 %v164, %v184
      %v187 = vlaneseq
      %v188 = vshrl.u32 %v187, 7
      %v189 = vsub.s32 0, %v188
      %v190 = vrot.slane %v185, %v189
      %v192 = vmul.f32 %v174, %v190
      %v194 = vlaneseq
      %v195 = vshrl.u32 %v194, 7
      %v196 = vsub.s32 0, %v195
      %v197 = vrot.slane %v165, %v196
      %v199 = vadd.f32 %v192, %v197
      %v200 = vmax.f32 %v199, 0.0
      %201 = vst [vmem:[#allocation2] sm:$0xff] %v200
      %s202 = scalar_lea.vmem %s1, 128
      %v203 = vld [vmem:[%s202] sm:$0xff]
      %v204 = vld [vmem:[%s202 + $0x8] sm:$0xff]
      %v205 = vld [vmem:[%s202 + $0x10] sm:$0xff]
      %v206 = vld [vmem:[%s202 + $0x18] sm:$0xff]
      %v207 = vld [vmem:[%s202 + $0x20] sm:$0xff]
      %v208 = vld [vmem:[%s202 + $0x28] sm:$0xff]
      %v209 = vld [vmem:[%s202 + $0x30] sm:$0xff]
      %v210 = vld [vmem:[%s202 + $0x38] sm:$0xff]
      %v211 = vld [vmem:[%s202 + $0x40] sm:$0xff]
      %v212 = vld [vmem:[%s202 + $0x48] sm:$0xff]
      %v213 = vld [vmem:[%s202 + $0x50] sm:$0xff]
      %v214 = vld [vmem:[%s202 + $0x58] sm:$0xff]
      %v215 = vld [vmem:[%s202 + $0x60] sm:$0xff]
      %v216 = vld [vmem:[%s202 + $0x68] sm:$0xff]
      %v217 = vld [vmem:[%s202 + $0x70] sm:$0xff]
      %v218 = vld [vmem:[%s202 + $0x78] sm:$0xff]
      %219 = vmatprep.subr.mxu0 0.0
      %220 = vmatpush1.msra.mxu0 %v203
      %221 = vmatprep.subr.mxu0 0.0
      %222 = vmatpush1.msra.mxu0 %v204
      %223 = vmatprep.subr.mxu0 0.0
      %224 = vmatpush1.msra.mxu0 %v205
      %225 = vmatprep.subr.mxu0 0.0
      %226 = vmatpush1.msra.mxu0 %v206
      %227 = vmatprep.subr.mxu0 0.0
      %228 = vmatpush1.msra.mxu0 %v207
      %229 = vmatprep.subr.mxu0 0.0
      %230 = vmatpush1.msra.mxu0 %v208
      %231 = vmatprep.subr.mxu0 0.0
      %232 = vmatpush1.msra.mxu0 %v209
      %233 = vmatprep.subr.mxu0 0.0
      %234 = vmatpush1.msra.mxu0 %v210
      %235 = vmatprep.subr.mxu0 0.0
      %236 = vmatpush1.msra.mxu0 %v211
      %237 = vmatprep.subr.mxu0 0.0
      %238 = vmatpush1.msra.mxu0 %v212
      %239 = vmatprep.subr.mxu0 0.0
      %240 = vmatpush1.msra.mxu0 %v213
      %241 = vmatprep.subr.mxu0 0.0
      %242 = vmatpush1.msra.mxu0 %v214
      %243 = vmatprep.subr.mxu0 0.0
      %244 = vmatpush1.msra.mxu0 %v215
      %245 = vmatprep.subr.mxu0 0.0
      %246 = vmatpush1.msra.mxu0 %v216
      %247 = vmatprep.subr.mxu0 0.0
      %248 = vmatpush1.msra.mxu0 %v217
      %249 = vmatprep.subr.mxu0 0.0
      %250 = vmatpush1.msra.mxu0 %v218
      %251 = vmatprep.subr.mxu0 0.0
      %252 = vmatpush1.msra.mxu0 0.0
      %253 = vmatprep.subr.mxu0 0.0
      %254 = vmatpush1.msra.mxu0 0.0
      %255 = vmatprep.subr.mxu0 0.0
      %256 = vmatpush1.msra.mxu0 0.0
      %257 = vmatprep.subr.mxu0 0.0
      %258 = vmatpush1.msra.mxu0 0.0
      %259 = vmatprep.subr.mxu0 0.0
      %260 = vmatpush1.msra.mxu0 0.0
      %261 = vmatprep.subr.mxu0 0.0
      %262 = vmatpush1.msra.mxu0 0.0
      %263 = vmatprep.subr.mxu0 0.0
      %264 = vmatpush1.msra.mxu0 0.0
      %265 = vmatprep.subr.mxu0 0.0
      %266 = vmatpush1.msra.mxu0 0.0
      %267 = vmatprep.subr.mxu0 0.0
      %268 = vmatpush1.msra.mxu0 0.0
      %269 = vmatprep.subr.mxu0 0.0
      %270 = vmatpush1.msra.mxu0 0.0
      %271 = vmatprep.subr.mxu0 0.0
      %272 = vmatpush1.msra.mxu0 0.0
      %273 = vmatprep.subr.mxu0 0.0
      %274 = vmatpush1.msra.mxu0 0.0
      %275 = vmatprep.subr.mxu0 0.0
      %276 = vmatpush1.msra.mxu0 0.0
      %277 = vmatprep.subr.mxu0 0.0
      %278 = vmatpush1.msra.mxu0 0.0
      %279 = vmatprep.subr.mxu0 0.0
      %280 = vmatpush1.msra.mxu0 0.0
      %281 = vmatprep.subr.mxu0 0.0
      %282 = vmatpush1.msra.mxu0 0.0
      %283 = vmatprep.mubr.f32.mxu0 0.0
      %284 = vmatmul.mubr.f32.gmra.mrb[0].mxu0 %v200
      %v285 = vpop.f32.mrb[0].mxu0
      %v286 = vadd.f32 0.0, %v285
      %v287 = vpop.f32.mrb[0].mxu0
      %288 = vdwg.mxu0
      %s289 = scalar_lea.vmem %s2, 1
      %v290 = vld [vmem:[%s289] sm:$0x1]
      %s291 = scalar_lea.vmem %s3, 1
      %v292 = vld [vmem:[%s291] sm:$0x1]
      %v293 = vrot.slane %v286, 4
      %v294 = vadd.f32 %v286, %v293
      %v295 = vrot.slane %v294, 2
      %v296 = vadd.f32 %v294, %v295
      %v297 = vrot.slane %v296, 1
      %v298 = vadd.f32 %v296, %v297
      %v299 = vmul.f32 %v298, %v172
      %v300 = vsub.f32 %v286, %v299
      %v301 = vmul.f32 %v300, %v300
      %v302 = vrot.slane %v301, 4
      %v303 = vadd.f32 %v301, %v302
      %v304 = vrot.slane %v303, 2
      %v305 = vadd.f32 %v303, %v304
      %v306 = vrot.slane %v305, 1
      %v307 = vadd.f32 %v305, %v306
      %v308 = vmul.f32 %v307, %v172
      %v309 = vadd.f32 %v308, 1e-05
      %v310 = vrsqrt.pop %v309
      %v311 = vmul.f32 %v290, %v310
      %v313 = vlaneseq
      %v314 = vshrl.u32 %v313, 7
      %v315 = vsub.s32 0, %v314
      %v316 = vrot.slane %v311, %v315
      %v318 = vmul.f32 %v300, %v316
      %v320 = vlaneseq
      %v321 = vshrl.u32 %v320, 7
      %v322 = vsub.s32 0, %v321
      %v323 = vrot.slane %v292, %v322
      %v325 = vadd.f32 %v318, %v323
      %v326 = vmax.f32 %v325, 0.0
      %327 = vst [vmem:[#allocation2 + $0x8] sm:$0xff] %v326
    $region33: #{skip_dense_connection_forward.1} parent=1 // pred_fallthru
      _
    %v328 = vld [vmem:[#allocation2] sm:$0xff]
    %v329 = vld [vmem:[#allocation2 + $0x8] sm:$0xff]
    %v330 = vld [vmem:[%s60] sm:$0xff]
    %v331 = vld [vmem:[%s60 + $0x8] sm:$0xff]
    %v332 = vld [vmem:[%s60 + $0x10] sm:$0xff]
    %v333 = vld [vmem:[%s60 + $0x18] sm:$0xff]
    %v334 = vld [vmem:[%s60 + $0x20] sm:$0xff]
    %v335 = vld [vmem:[%s60 + $0x28] sm:$0xff]
    %v336 = vld [vmem:[%s60 + $0x30] sm:$0xff]
    %v337 = vld [vmem:[%s60 + $0x38] sm:$0xff]
    %v338 = vld [vmem:[%s60 + $0x40] sm:$0xff]
    %v339 = vld [vmem:[%s60 + $0x48] sm:$0xff]
    %v340 = vld [vmem:[%s60 + $0x50] sm:$0xff]
    %v341 = vld [vmem:[%s60 + $0x58] sm:$0xff]
    %v342 = vld [vmem:[%s60 + $0x60] sm:$0xff]
    %v343 = vld [vmem:[%s60 + $0x68] sm:$0xff]
    %v344 = vld [vmem:[%s60 + $0x70] sm:$0xff]
    %v345 = vld [vmem:[%s60 + $0x78] sm:$0xff]
    %v346 = vld [vmem:[%s60 + $0x80] sm:$0xff]
    %v347 = vld [vmem:[%s60 + $0x88] sm:$0xff]
    %v348 = vld [vmem:[%s60 + $0x90] sm:$0xff]
    %v349 = vld [vmem:[%s60 + $0x98] sm:$0xff]
    %v350 = vld [vmem:[%s60 + $0xa0] sm:$0xff]
    %v351 = vld [vmem:[%s60 + $0xa8] sm:$0xff]
    %v352 = vld [vmem:[%s60 + $0xb0] sm:$0xff]
    %v353 = vld [vmem:[%s60 + $0xb8] sm:$0xff]
    %v354 = vld [vmem:[%s60 + $0xc0] sm:$0xff]
    %v355 = vld [vmem:[%s60 + $0xc8] sm:$0xff]
    %v356 = vld [vmem:[%s60 + $0xd0] sm:$0xff]
    %v357 = vld [vmem:[%s60 + $0xd8] sm:$0xff]
    %v358 = vld [vmem:[%s60 + $0xe0] sm:$0xff]
    %v359 = vld [vmem:[%s60 + $0xe8] sm:$0xff]
    %v360 = vld [vmem:[%s60 + $0xf0] sm:$0xff]
    %v361 = vld [vmem:[%s60 + $0xf8] sm:$0xff]
    %362 = vmatprep.subr.mxu0 0.0
    %363 = vmatpush1.msra.mxu0 %v330
    %364 = vmatprep.subr.mxu0 0.0
    %365 = vmatpush1.msra.mxu0 %v331
    %366 = vmatprep.subr.mxu0 0.0
    %367 = vmatpush1.msra.mxu0 %v332
    %368 = vmatprep.subr.mxu0 0.0
    %369 = vmatpush1.msra.mxu0 %v333
    %370 = vmatprep.subr.mxu0 0.0
    %371 = vmatpush1.msra.mxu0 %v334
    %372 = vmatprep.subr.mxu0 0.0
    %373 = vmatpush1.msra.mxu0 %v335
    %374 = vmatprep.subr.mxu0 0.0
    %375 = vmatpush1.msra.mxu0 %v336
    %376 = vmatprep.subr.mxu0 0.0
    %377 = vmatpush1.msra.mxu0 %v337
    %378 = vmatprep.subr.mxu0 0.0
    %379 = vmatpush1.msra.mxu0 %v338
    %380 = vmatprep.subr.mxu0 0.0
    %381 = vmatpush1.msra.mxu0 %v339
    %382 = vmatprep.subr.mxu0 0.0
    %383 = vmatpush1.msra.mxu0 %v340
    %384 = vmatprep.subr.mxu0 0.0
    %385 = vmatpush1.msra.mxu0 %v341
    %386 = vmatprep.subr.mxu0 0.0
    %387 = vmatpush1.msra.mxu0 %v342
    %388 = vmatprep.subr.mxu0 0.0
    %389 = vmatpush1.msra.mxu0 %v343
    %390 = vmatprep.subr.mxu0 0.0
    %391 = vmatpush1.msra.mxu0 %v344
    %392 = vmatprep.subr.mxu0 0.0
    %393 = vmatpush1.msra.mxu0 %v345
    %394 = vmatprep.subr.mxu0 0.0
    %395 = vmatpush1.msra.mxu0 %v346
    %396 = vmatprep.subr.mxu0 0.0
    %397 = vmatpush1.msra.mxu0 %v347
    %398 = vmatprep.subr.mxu0 0.0
    %399 = vmatpush1.msra.mxu0 %v348
    %400 = vmatprep.subr.mxu0 0.0
    %401 = vmatpush1.msra.mxu0 %v349
    %402 = vmatprep.subr.mxu0 0.0
    %403 = vmatpush1.msra.mxu0 %v350
    %404 = vmatprep.subr.mxu0 0.0
    %405 = vmatpush1.msra.mxu0 %v351
    %406 = vmatprep.subr.mxu0 0.0
    %407 = vmatpush1.msra.mxu0 %v352
    %408 = vmatprep.subr.mxu0 0.0
    %409 = vmatpush1.msra.mxu0 %v353
    %410 = vmatprep.subr.mxu0 0.0
    %411 = vmatpush1.msra.mxu0 %v354
    %412 = vmatprep.subr.mxu0 0.0
    %413 = vmatpush1.msra.mxu0 %v355
    %414 = vmatprep.subr.mxu0 0.0
    %415 = vmatpush1.msra.mxu0 %v356
    %416 = vmatprep.subr.mxu0 0.0
    %417 = vmatpush1.msra.mxu0 %v357
    %418 = vmatprep.subr.mxu0 0.0
    %419 = vmatpush1.msra.mxu0 %v358
    %420 = vmatprep.subr.mxu0 0.0
    %421 = vmatpush1.msra.mxu0 %v359
    %422 = vmatprep.subr.mxu0 0.0
    %423 = vmatpush1.msra.mxu0 %v360
    %424 = vmatprep.subr.mxu0 0.0
    %425 = vmatpush1.msra.mxu0 %v361
    %426 = vmatprep.mubr.f32.mxu0 %v329
    %427 = vmatmul.mubr.f32.gmra.mrb[0].mxu0 %v328
    %v428 = vpop.f32.mrb[0].mxu0
    %v429 = vadd.f32 0.0, %v428
    %v430 = vpop.f32.mrb[0].mxu0
    %431 = vdwg.mxu0
    %v432 = vld [vmem:[%s65] sm:$0x1]
    %v433 = vld [vmem:[%s70] sm:$0x1]
    %v434 = vrot.slane %v429, 4
    %v435 = vadd.f32 %v429, %v434
    %v436 = vrot.slane %v435, 2
    %v437 = vadd.f32 %v435, %v436
    %v438 = vrot.slane %v437, 1
    %v439 = vadd.f32 %v437, %v438
    %v440 = vrcp.pop 8.0
    %v441 = vmul.f32 %v439, %v440
    %v442 = vsub.f32 %v429, %v441
    %v443 = vmul.f32 %v442, %v442
    %v444 = vrot.slane %v443, 4
    %v445 = vadd.f32 %v443, %v444
    %v446 = vrot.slane %v445, 2
    %v447 = vadd.f32 %v445, %v446
    %v448 = vrot.slane %v447, 1
    %v449 = vadd.f32 %v447, %v448
    %v450 = vmul.f32 %v449, %v440
    %v451 = vadd.f32 %v450, 1e-05
    %v452 = vrsqrt.pop %v451
    %v453 = vmul.f32 %v432, %v452
    %v455 = vlaneseq
    %v456 = vshrl.u32 %v455, 7
    %v457 = vsub.s32 0, %v456
    %v458 = vrot.slane %v453, %v457
    %v460 = vmul.f32 %v442, %v458
    %v462 = vlaneseq
    %v463 = vshrl.u32 %v462, 7
    %v464 = vsub.s32 0, %v463
    %v465 = vrot.slane %v433, %v464
    %v467 = vadd.f32 %v460, %v465
    %v468 = vmax.f32 %v467, 0.0
    %469 = vst [vmem:[#allocation3] sm:$0xff] %v468
    // Predicated region
    $region34: #{skip_dense_connection_forward.1} parent=1 // pred_check
      _
    $region35: #{skip_dense_connection_forward.1} parent=1 // pred_check_branch
      %471 = sbr.rel (0) target = $region37
    $region36: #{skip_dense_connection_forward.1} parent=1 // pred_region
      %s472 = sadd.s32 0, 0
      %s474 = ssub.s32 128, 128
      %475 = vsyncadd [#allocation4], %s474
      %s476 = smul.addr %s472, 128
      %s477 = scalar_lea.hbm %s7, %s476
      %s479 = sshll.u32 [#allocation3], 4
      %s480 = int_to_ptr.vmem [resolvable:$true] %s479
      %482 = dma.vmem_to_hbm [thread:$0]  %s480, 128, %s477, [#allocation4]
    $region37: #{skip_dense_connection_forward.1} parent=1 // pred_fallthru
      _
    // Predicated region
    $region38: #{skip_dense_connection_forward.1} parent=1 // pred_check
      _
    $region39: #{skip_dense_connection_forward.1} parent=1 // pred_check_branch
      %484 = sbr.rel (0) target = $region41
    $region40: #{skip_dense_connection_forward.1} parent=1 // pred_region
      %485 = dma.done [#allocation4], 128
    $region41: #{skip_dense_connection_forward.1} parent=1 // pred_fallthru
      _
    %486 = vsyncpa [#allocation4], 1

</llo_original>
